<compile_context>
chip_gen: v6e
topology: v6e:2x2x1
jax: 0.10.0
libtpu: 0.0.40
codegen_flags: <defaults>
</compile_context>

<pallas_src>
import jax
import jax.numpy as jnp
from jax.experimental import pallas as pl
from jax.experimental.pallas import tpu as pltpu


def _frozen_bn_kernel(x_ref, w_ref, b_ref, rm_ref, rv_ref, o_ref):
    # x_ref/o_ref: (row_block, lane_block); params: (row_block, 1) per-(n,c)-row.
    eps = jnp.float32(1e-5)
    w = w_ref[...]
    b = b_ref[...]
    rm = rm_ref[...]
    rv = rv_ref[...]
    scale = w * jax.lax.rsqrt(rv + eps)          # (row_block, 1), rsqrt on EUP
    bias = b - rm * scale                        # (row_block, 1)
    x = x_ref[...].astype(jnp.float32)
    o_ref[...] = (x * scale + bias).astype(o_ref.dtype)  # lane-broadcast FMA


def frozen_batch_norm_2d(x_nchw, weight, bias, running_mean, running_var):
    """x_nchw: (N, C, H, W); params: (C,). Output dtype == input dtype."""
    n, c, h, w = x_nchw.shape
    rows = n * c
    cols = h * w
    dtype = x_nchw.dtype

    # Free, layout-preserving reshape: NCHW -> (N*C, H*W). No transpose, no pad.
    x2d = x_nchw.reshape(rows, cols)

    # Tiny O(N*C) param columns; row r of x2d corresponds to channel r % C.
    def _col(p):
        return jnp.tile(p.astype(jnp.float32), n).reshape(rows, 1)

    w_col = _col(weight)
    b_col = _col(bias)
    rm_col = _col(running_mean)
    rv_col = _col(running_var)

    # --- Block sizing ---------------------------------------------------
    # Target ~2 MiB per x tile so the double-buffered in+out footprint
    # (~4x tile, ~8 MiB) fits the default scoped-VMEM limit on every
    # generation (v5e 16 MiB, v6e 32 MiB, v7x 32 MiB of 64 MiB physical),
    # while staying large enough to amortize the ~0.35 us per-step overhead.
    itemsize = jnp.dtype(dtype).itemsize
    sub_mult = 8 * max(1, 4 // itemsize)         # 8 (f32) / 16 (bf16) / 32 (i8)

    lane_target = 2048
    # Lane block: full dim (always legal) if small enough, else a multiple of 128.
    lane_block = cols if cols <= lane_target else lane_target

    target_bytes = 2 * 1024 * 1024
    row_target = max(sub_mult, target_bytes // max(1, lane_block * itemsize))
    row_target = max(sub_mult, (row_target // sub_mult) * sub_mult)
    row_block = rows if rows <= row_target else row_target

    grid = (pl.cdiv(rows, row_block), pl.cdiv(cols, lane_block))

    x_spec = pl.BlockSpec((row_block, lane_block), lambda i, j: (i, j))
    p_spec = pl.BlockSpec((row_block, 1), lambda i, j: (i, 0))

    out2d = pl.pallas_call(
        _frozen_bn_kernel,
        out_shape=jax.ShapeDtypeStruct((rows, cols), dtype),
        grid_spec=pltpu.PrefetchScalarGridSpec(
            num_scalar_prefetch=0,
            grid=grid,
            in_specs=[x_spec, p_spec, p_spec, p_spec, p_spec],
            out_specs=x_spec,
        ),
        compiler_params=pltpu.CompilerParams(
            dimension_semantics=("parallel", "parallel")),
    )(x2d, w_col, b_col, rm_col, rv_col)

    # Free reshape back to NCHW.
    return out2d.reshape(n, c, h, w)


def _reference(x, weight, bias, running_mean, running_var):
    # Mirrors the PyTorch forward exactly (in f32).
    c = weight.shape[0]
    eps = jnp.float32(1e-5)
    scale = weight.reshape(1, c, 1, 1) * jax.lax.rsqrt(
        running_var.reshape(1, c, 1, 1) + eps)
    bias_t = bias.reshape(1, c, 1, 1) - running_mean.reshape(1, c, 1, 1) * scale
    return x.astype(jnp.float32) * scale + bias_t


if __name__ == "__main__":
    key = jax.random.PRNGKey(0)
    n, c, h, w = 2, 4, 16, 16
    kx, kw, kb, km, kv = jax.random.split(key, 5)

    x = jax.random.normal(kx, (n, c, h, w), dtype=jnp.float32)
    # Deterministic "frozen" buffers (shapes match FrozenBatchNorm2d(n=c))
    weight = 1.0 + 0.1 * jax.random.normal(kw, (c,), dtype=jnp.float32)
    bias = 0.1 * jax.random.normal(kb, (c,), dtype=jnp.float32)
    running_mean = 0.05 * jax.random.normal(km, (c,), dtype=jnp.float32)
    running_var = jnp.abs(1.0 + 0.1 * jax.random.normal(kv, (c,), dtype=jnp.float32))

    # f32 path
    out = frozen_batch_norm_2d(x, weight, bias, running_mean, running_var)
    out = jax.block_until_ready(out)
    ref = _reference(x, weight, bias, running_mean, running_var)
    assert out.shape == x.shape and out.dtype == x.dtype
    assert jnp.allclose(out, ref, atol=1e-5, rtol=1e-5)

    # bf16 path: output dtype must follow the input dtype.
    x_bf16 = x.astype(jnp.bfloat16)
    out_bf16 = frozen_batch_norm_2d(x_bf16, weight, bias, running_mean, running_var)
    out_bf16 = jax.block_until_ready(out_bf16)
    ref_bf16 = _reference(x_bf16, weight, bias, running_mean, running_var)
    assert out_bf16.shape == x.shape and out_bf16.dtype == jnp.bfloat16
    assert jnp.allclose(out_bf16.astype(jnp.float32), ref_bf16, atol=2e-2, rtol=2e-2)

    print("KERNEL_OK")
</pallas_src>

<mosaic_0001>
module attributes {stable_mosaic.version = 11 : i64} {
  func.func @_frozen_bn_kernel(%arg0: i32, %arg1: i32, %arg2: memref<8x256xf32, #tpu.memory_space<vmem>>, %arg3: memref<8x1xf32, #tpu.memory_space<vmem>>, %arg4: memref<8x1xf32, #tpu.memory_space<vmem>>, %arg5: memref<8x1xf32, #tpu.memory_space<vmem>>, %arg6: memref<8x1xf32, #tpu.memory_space<vmem>>, %arg7: memref<8x256xf32, #tpu.memory_space<vmem>>) attributes {dimension_semantics = [#tpu.dimension_semantics<parallel>, #tpu.dimension_semantics<parallel>], iteration_bounds = array<i64: 1, 1>, scalar_prefetch = 0 : i64, scratch_operands = 0 : i64, tpu.core_type = #tpu.core_type<tc>, window_params = [{transform_indices = @transform_0, window_bounds = array<i64: 8, 256>}, {transform_indices = @transform_1, window_bounds = array<i64: 8, 1>}, {transform_indices = @transform_2, window_bounds = array<i64: 8, 1>}, {transform_indices = @transform_3, window_bounds = array<i64: 8, 1>}, {transform_indices = @transform_4, window_bounds = array<i64: 8, 1>}, {transform_indices = @transform_5, window_bounds = array<i64: 8, 256>}]} {
    %c0 = arith.constant 0 : index
    %c0_0 = arith.constant 0 : index
    %0 = vector.load %arg3[%c0, %c0_0] : memref<8x1xf32, #tpu.memory_space<vmem>>, vector<8x1xf32>
    %c0_1 = arith.constant 0 : index
    %c0_2 = arith.constant 0 : index
    %1 = vector.load %arg4[%c0_1, %c0_2] : memref<8x1xf32, #tpu.memory_space<vmem>>, vector<8x1xf32>
    %c0_3 = arith.constant 0 : index
    %c0_4 = arith.constant 0 : index
    %2 = vector.load %arg5[%c0_3, %c0_4] : memref<8x1xf32, #tpu.memory_space<vmem>>, vector<8x1xf32>
    %c0_5 = arith.constant 0 : index
    %c0_6 = arith.constant 0 : index
    %3 = vector.load %arg6[%c0_5, %c0_6] : memref<8x1xf32, #tpu.memory_space<vmem>>, vector<8x1xf32>
    %cst = arith.constant 9.99999974E-6 : f32
    %4 = vector.broadcast %cst : f32 to vector<8x1xf32>
    %5 = arith.addf %3, %4 : vector<8x1xf32>
    %6 = math.rsqrt %5 : vector<8x1xf32>
    %7 = arith.mulf %0, %6 : vector<8x1xf32>
    %8 = arith.mulf %2, %7 : vector<8x1xf32>
    %9 = arith.subf %1, %8 : vector<8x1xf32>
    %c0_7 = arith.constant 0 : index
    %c0_8 = arith.constant 0 : index
    %10 = vector.load %arg2[%c0_7, %c0_8] : memref<8x256xf32, #tpu.memory_space<vmem>>, vector<8x256xf32>
    %11 = vector.broadcast %7 : vector<8x1xf32> to vector<8x256xf32>
    %12 = arith.mulf %10, %11 : vector<8x256xf32>
    %13 = vector.broadcast %9 : vector<8x1xf32> to vector<8x256xf32>
    %14 = arith.addf %12, %13 : vector<8x256xf32>
    %c0_9 = arith.constant 0 : index
    %c0_10 = arith.constant 0 : index
    %15 = vector.load %arg7[%c0_9, %c0_10] : memref<8x256xf32, #tpu.memory_space<vmem>>, vector<8x256xf32>
    tpu.vector_store %arg7[%c0_9, %c0_10], %14 {strides = array<i32>} : memref<8x256xf32, #tpu.memory_space<vmem>>, vector<8x256xf32>,
    return
  }
  func.func @transform_0(%arg0: i32, %arg1: i32) -> (i32, i32) {
    %c0_i32 = arith.constant 0 : i32
    return %arg0, %arg1 : i32, i32
  }
  func.func @transform_1(%arg0: i32, %arg1: i32) -> (i32, i32) {
    %c0_i32 = arith.constant 0 : i32
    %c0_i32_0 = arith.constant 0 : i32
    return %arg0, %c0_i32 : i32, i32
  }
  func.func @transform_2(%arg0: i32, %arg1: i32) -> (i32, i32) {
    %c0_i32 = arith.constant 0 : i32
    %c0_i32_0 = arith.constant 0 : i32
    return %arg0, %c0_i32 : i32, i32
  }
  func.func @transform_3(%arg0: i32, %arg1: i32) -> (i32, i32) {
    %c0_i32 = arith.constant 0 : i32
    %c0_i32_0 = arith.constant 0 : i32
    return %arg0, %c0_i32 : i32, i32
  }
  func.func @transform_4(%arg0: i32, %arg1: i32) -> (i32, i32) {
    %c0_i32 = arith.constant 0 : i32
    %c0_i32_0 = arith.constant 0 : i32
    return %arg0, %c0_i32 : i32, i32
  }
  func.func @transform_5(%arg0: i32, %arg1: i32) -> (i32, i32) {
    %c0_i32 = arith.constant 0 : i32
    return %arg0, %arg1 : i32, i32
  }
}

</mosaic_0001>

<llo_original>
// kernel: tpu_custom_call.1
$region0: #{tpu_custom_call.1}
  #allocation0 [shape = 'u32[]', space=smem, size = 0x4, offset = 0x4, fixed_abs, tag = 'smem constant byte address 0x4 - core index']
  #allocation1 [shape = 'u32[144,128]{1,0:T(1,128)}', space=vmem, size = 0x12000, scoped, tag = 'internal scratch']
  %s0 = inlined_call_operand.vmem [shape: f32[8,256], index: 0, kind: input, shape index: {}]
  %s1 = inlined_call_operand.vmem [shape: f32[8,1], index: 1, kind: input, shape index: {}]
  %s2 = inlined_call_operand.vmem [shape: f32[8,1], index: 2, kind: input, shape index: {}]
  %s3 = inlined_call_operand.vmem [shape: f32[8,1], index: 3, kind: input, shape index: {}]
  %s4 = inlined_call_operand.vmem [shape: f32[8,1], index: 4, kind: input, shape index: {}]
  %s5 = inlined_call_operand.hbm [shape: f32[8,256], index: 5, kind: output, shape index: {}]
  %s6 = sld [smem:[#allocation0]]
  $region30: #{tpu_custom_call.1} parent=0
    _
  %s8 = ssub.s32 1, %s6
  %s9 = scalar_select 0, %s8, %s6
  $region1: #{tpu_custom_call.1} parent=0
    #allocation2 [shape = 'u8[8192]{0}', space=vmem, size = 0x2000, scoped, tag = 'output window, operand 0, single buffered']
    #allocation3 [shape = 's32[1]{0}', space=sflag, size = 0x4, scoped, tag = 'scoped memory for tpu_custom_call.1']
    %10 = vsyncpa [#allocation3], 0
    // Predicated region
    $region2: #{tpu_custom_call.1} parent=1 // pred_check
      _
    $region3: #{tpu_custom_call.1} parent=1 // pred_check_branch
      %12 = sbr.rel (0) target = $region5
    $region4: #{tpu_custom_call.1} parent=1 // pred_region
      _
    $region5: #{tpu_custom_call.1} parent=1 // pred_fallthru
      _
    // Predicated region
    $region6: #{tpu_custom_call.1} parent=1 // pred_check
      _
    $region7: #{tpu_custom_call.1} parent=1 // pred_check_branch
      %14 = sbr.rel (0) target = $region9
    $region8: #{tpu_custom_call.1} parent=1 // pred_region
      _
    $region9: #{tpu_custom_call.1} parent=1 // pred_fallthru
      _
    // Predicated region
    $region10: #{tpu_custom_call.1} parent=1 // pred_check
      _
    $region11: #{tpu_custom_call.1} parent=1 // pred_check_branch
      %16 = sbr.rel (0) target = $region13
    $region12: #{tpu_custom_call.1} parent=1 // pred_region
      _
    $region13: #{tpu_custom_call.1} parent=1 // pred_fallthru
      _
    // Predicated region
    $region14: #{tpu_custom_call.1} parent=1 // pred_check
      _
    $region15: #{tpu_custom_call.1} parent=1 // pred_check_branch
      %18 = sbr.rel (0) target = $region17
    $region16: #{tpu_custom_call.1} parent=1 // pred_region
      _
    $region17: #{tpu_custom_call.1} parent=1 // pred_fallthru
      _
    // Predicated region
    $region18: #{tpu_custom_call.1} parent=1 // pred_check
      _
    $region19: #{tpu_custom_call.1} parent=1 // pred_check_branch
      %20 = sbr.rel (0) target = $region21
    $region20: #{tpu_custom_call.1} parent=1 // pred_region
      _
    $region21: #{tpu_custom_call.1} parent=1 // pred_fallthru
      _
    %v21 = vld [vmem:[%s1] sm:$0xff]
    %v22 = vld [vmem:[%s2] sm:$0xff]
    %v23 = vld [vmem:[%s3] sm:$0xff]
    %v24 = vld [vmem:[%s4] sm:$0xff]
    %v25 = vadd.f32 %v24, 1e-05
    %v26 = vrsqrt.pop %v25
    %v27 = vmul.f32 %v21, %v26
    %v28 = vmul.f32 %v23, %v27
    %v29 = vsub.f32 %v22, %v28
    %v30 = vld [vmem:[%s0] sm:$0xff]
    %v31 = vld [vmem:[%s0 + $0x8] sm:$0xff]
    %33 = vset.pattern.permute.xlu0 0
    %34 = vperm.xlu0 %33, %v27
    %v35 = vpop.permute.xlu0 %34
    %v37 = vmul.f32 %v30, %v35
    %v38 = vmul.f32 %v31, %v35
    %40 = vset.pattern.permute.xlu0 0
    %41 = vperm.xlu0 %40, %v29
    %v42 = vpop.permute.xlu0 %41
    %v44 = vadd.f32 %v37, %v42
    %v45 = vadd.f32 %v38, %v42
    %46 = vst [vmem:[#allocation2] sm:$0xff] %v44
    %47 = vst [vmem:[#allocation2 + $0x8] sm:$0xff] %v45
    // Predicated region
    $region22: #{tpu_custom_call.1} parent=1 // pred_check
      _
    $region23: #{tpu_custom_call.1} parent=1 // pred_check_branch
      %49 = sbr.rel (0) target = $region25
    $region24: #{tpu_custom_call.1} parent=1 // pred_region
      %s51 = ssub.s32 256, 256
      %52 = vsyncadd [#allocation3], %s51
      %s54 = sshll.u32 [#allocation2], 4
      %s55 = int_to_ptr.vmem [resolvable:$true] %s54
      %57 = dma.vmem_to_hbm [thread:$0]  %s55, 256, %s5, [#allocation3]
    $region25: #{tpu_custom_call.1} parent=1 // pred_fallthru
      _
    // Predicated region
    $region26: #{tpu_custom_call.1} parent=1 // pred_check
      _
    $region27: #{tpu_custom_call.1} parent=1 // pred_check_branch
      %59 = sbr.rel (0) target = $region29
    $region28: #{tpu_custom_call.1} parent=1 // pred_region
      %60 = dma.done [#allocation3], 256
    $region29: #{tpu_custom_call.1} parent=1 // pred_fallthru
      _
    %61 = vsyncpa [#allocation3], 1

</llo_original>
